<compile_context>
chip_gen: v7x
topology: tpu7x:2x2x1
jax: 0.10.0
libtpu: 0.0.40
codegen_flags: <defaults>
</compile_context>

<pallas_src>
import jax
import jax.numpy as jnp
from jax.experimental import pallas as pl
from jax.experimental.pallas import tpu as pltpu

LANE = 128      # vreg lane width
SUBLANE = 8     # vreg sublane count


def _round_up(n, m):
    return ((n + m - 1) // m) * m


def _mlp_softmax_kernel(x_ref, w1_ref, b1_ref, w2_ref, b2_ref, o_ref):
    # linear1: cast the raw f32 activation tile to bf16 HERE (not in the wrapper) so both
    # matmuls take the bf16 MXU path with f32 accumulation.
    x = x_ref[...].astype(w1_ref.dtype)
    h = jnp.dot(x, w1_ref[...], preferred_element_type=jnp.float32)
    h = jnp.maximum(h + b1_ref[...], 0.0)                         # ReLU in f32

    # linear2 (hidden recast to bf16 for the MXU). Padded output lanes carry a -1e30 bias
    # baked into b2 at init (w2 pad columns are zero), so no in-kernel mask is needed.
    logits = jnp.dot(h.astype(w2_ref.dtype), w2_ref[...],
                     preferred_element_type=jnp.float32) + b2_ref[...]

    # Numerically stable softmax in f32. Pad lanes: exp(-1e30 - m) underflows to exactly 0,
    # so they drop out of the denominator. Exact divide (NOT pl.reciprocal(approx=True)):
    # the approx EUP recip's ~2^-8 rel error breaks sum(softmax)==1, and this epilogue is
    # nowhere near the bottleneck.
    m = jnp.max(logits, axis=-1, keepdims=True)
    e = jnp.exp(logits - m)
    denom = jnp.sum(e, axis=-1, keepdims=True)
    o_ref[...] = (e / denom).astype(o_ref.dtype)


def neural_network_forward(x, w1, b1, w2, b2, out_size, *, tb_max=512,
                           out_dtype=jnp.float32, single_buffer_weights=False):
    """Fused Linear->ReLU->Linear->Softmax forward.

    x : (B, In) f32 (raw, unpadded)
    w1: (In, H_p) bf16          b1: (1, H_p) f32
    w2: (H_p, Out_p) bf16       b2: (1, Out_p) f32 with b2[:, out_size:] == -1e30
    Returns (B, out_size) `out_dtype` softmax probabilities.
    """
    B, in_size = x.shape
    assert w1.shape[0] == in_size
    h_p = w1.shape[1]
    out_p = w2.shape[1]
    assert w2.shape[0] == h_p and b1.shape == (1, h_p) and b2.shape == (1, out_p)

    # Remainder-aware batch tiling: pick the tile count first so the last tile carries at
    # most 7 dead rows, cap tile size at tb_max (512-1024 rows ~85% of HBM roofline vs ~63%
    # at 256), and for larger batches force >=2 grid steps so the "parallel" batch axis
    # actually uses both v7x TensorCores (no effect on single-TC v5e/v6e).
    n_tiles = max(1, pl.cdiv(B, tb_max))
    if B >= 64:
        n_tiles = max(n_tiles, 2)
    tb = _round_up(pl.cdiv(B, n_tiles), SUBLANE)
    b_p = _round_up(B, tb)
    x_p = x if b_p == B else jnp.pad(x, ((0, b_p - B), (0, 0)))

    # Weight/bias blocks have constant index_maps -> VMEM-resident across the grid. With
    # large weights (v7x 32-of-64 MiB scoped, v5e 16 MiB) single-buffer them so default
    # double-buffering doesn't double their footprint; irrelevant at these demo sizes.
    wkw = dict(pipeline_mode=pl.Buffered(1)) if single_buffer_weights else {}
    in_specs = [
        # Raw f32 activations, tiled over batch. Last dim == full array dim, so no 128-lane
        # pad of x is needed anywhere.
        pl.BlockSpec((tb, in_size), lambda i: (i, 0)),
        pl.BlockSpec((in_size, h_p), lambda i: (0, 0), **wkw),    # resident weights / biases
        pl.BlockSpec((1, h_p), lambda i: (0, 0), **wkw),
        pl.BlockSpec((h_p, out_p), lambda i: (0, 0), **wkw),
        pl.BlockSpec((1, out_p), lambda i: (0, 0), **wkw),
    ]
    out_specs = pl.BlockSpec((tb, out_p), lambda i: (i, 0))       # lane-dense (Out_p % 128 == 0)

    # Size scoped VMEM deliberately once resident weights grow (v5e default is only 16 MiB);
    # leave the compiler default for small problems.  TODO(synk): cap at 64 MiB on v7x.
    out_itemsize = jax.dtypes.canonicalize_dtype(out_dtype).itemsize
    weight_bytes = sum(int(a.size) * a.dtype.itemsize for a in (w1, b1, w2, b2))
    weight_bufs = 1 if single_buffer_weights else 2
    vmem_est = (weight_bufs * weight_bytes
                + 2 * tb * in_size * x.dtype.itemsize     # double-buffered input tiles
                + 2 * tb * out_p * out_itemsize           # double-buffered output tiles
                + 2 * tb * h_p * 4)                       # f32 hidden / logits intermediates
    vmem_limit = None
    if vmem_est > 12 * 1024 * 1024:
        vmem_limit = int(min(1.5 * vmem_est, 100 * 1024 * 1024))

    out = pl.pallas_call(
        _mlp_softmax_kernel,
        out_shape=jax.ShapeDtypeStruct((b_p, out_p), out_dtype),
        grid_spec=pltpu.PrefetchScalarGridSpec(
            num_scalar_prefetch=0,
            grid=(b_p // tb,),
            in_specs=in_specs,
            out_specs=out_specs,
        ),
        compiler_params=pltpu.CompilerParams(
            dimension_semantics=("parallel",),   # batch tiles shard across v7x's 2 TCs
            vmem_limit_bytes=vmem_limit,
        ),
    )(x_p, w1, b1, w2, b2)

    return out[:B, :out_size]


def init_params(key, input_size, hidden_size, output_size):
    """nn.Linear-style U(-1/sqrt(fan_in), 1/sqrt(fan_in)) init. Hidden/output feature dims
    (which feed the MXU and lane-dense stores) are padded to 128 once at init; the input dim
    stays unpadded (kernel reads raw f32 x). The softmax pad-mask is baked into b2."""
    k1, k2, k3, k4 = jax.random.split(key, 4)
    bound1 = 1.0 / jnp.sqrt(input_size)
    bound2 = 1.0 / jnp.sqrt(hidden_size)
    w1 = jax.random.uniform(k1, (input_size, hidden_size), jnp.float32, -bound1, bound1)
    b1 = jax.random.uniform(k2, (1, hidden_size), jnp.float32, -bound1, bound1)
    w2 = jax.random.uniform(k3, (hidden_size, output_size), jnp.float32, -bound2, bound2)
    b2 = jax.random.uniform(k4, (1, output_size), jnp.float32, -bound2, bound2)

    h_p = _round_up(hidden_size, LANE)
    out_p = _round_up(output_size, LANE)

    w1p = jnp.pad(w1, ((0, 0), (0, h_p - hidden_size))).astype(jnp.bfloat16)
    b1p = jnp.pad(b1, ((0, 0), (0, h_p - hidden_size)))                        # stays f32
    w2p = jnp.pad(w2, ((0, h_p - hidden_size), (0, out_p - output_size))).astype(jnp.bfloat16)
    # Padded logit lanes = 0 (zero w2 pad columns) + (-1e30) -> exp underflows to exactly 0.
    b2p = jnp.pad(b2, ((0, 0), (0, out_p - output_size)), constant_values=-1e30)  # stays f32
    return w1p, b1p, w2p, b2p


if __name__ == "__main__":
    key = jax.random.PRNGKey(0)
    batch, input_size, hidden_size, output_size = 8, 32, 64, 16

    kx, kp = jax.random.split(key)
    x = jax.random.normal(kx, (batch, input_size), jnp.float32)
    w1, b1, w2, b2 = init_params(kp, input_size, hidden_size, output_size)

    out = neural_network_forward(x, w1, b1, w2, b2, output_size)
    jax.block_until_ready(out)

    # Reference in plain JAX with the same bf16 quantization of x / weights / hidden
    # (f32 accumulation), matching the kernel's numerics.
    x16 = x.astype(jnp.bfloat16).astype(jnp.float32)
    w1f = w1[:, :hidden_size].astype(jnp.float32)
    b1f = b1[:, :hidden_size]
    w2f = w2[:hidden_size, :output_size].astype(jnp.float32)
    b2f = b2[:, :output_size]
    h_ref = jnp.maximum(x16 @ w1f + b1f, 0.0)
    h16 = h_ref.astype(jnp.bfloat16).astype(jnp.float32)
    logits_ref = h16 @ w2f + b2f
    ref = jax.nn.softmax(logits_ref, axis=1)

    assert out.shape == (batch, output_size)
    assert jnp.allclose(out, ref, atol=2e-3, rtol=2e-3)
    assert jnp.allclose(jnp.sum(out, axis=1), 1.0, atol=1e-3)   # exact divide -> sums to 1
    print("KERNEL_OK")
</pallas_src>

<mosaic_0001>
module attributes {stable_mosaic.version = 11 : i64} {
  func.func @_mlp_softmax_kernel(%arg0: i32, %arg1: memref<8x32xf32, #tpu.memory_space<vmem>>, %arg2: memref<32x128xbf16, #tpu.memory_space<vmem>>, %arg3: memref<1x128xf32, #tpu.memory_space<vmem>>, %arg4: memref<128x128xbf16, #tpu.memory_space<vmem>>, %arg5: memref<1x128xf32, #tpu.memory_space<vmem>>, %arg6: memref<8x128xf32, #tpu.memory_space<vmem>>) attributes {dimension_semantics = [#tpu.dimension_semantics<parallel>], iteration_bounds = array<i64: 1>, scalar_prefetch = 0 : i64, scratch_operands = 0 : i64, tpu.core_type = #tpu.core_type<tc>, window_params = [{transform_indices = @transform_0, window_bounds = array<i64: 8, 32>}, {pipeline_mode = #tpu.pipeline_mode<synchronous>, transform_indices = @transform_1, window_bounds = array<i64: 32, 128>}, {pipeline_mode = #tpu.pipeline_mode<synchronous>, transform_indices = @transform_2, window_bounds = array<i64: 1, 128>}, {pipeline_mode = #tpu.pipeline_mode<synchronous>, transform_indices = @transform_3, window_bounds = array<i64: 128, 128>}, {pipeline_mode = #tpu.pipeline_mode<synchronous>, transform_indices = @transform_4, window_bounds = array<i64: 1, 128>}, {transform_indices = @transform_5, window_bounds = array<i64: 8, 128>}]} {
    %c0 = arith.constant 0 : index
    %c0_0 = arith.constant 0 : index
    %0 = vector.load %arg1[%c0, %c0_0] : memref<8x32xf32, #tpu.memory_space<vmem>>, vector<8x32xf32>
    %1 = arith.truncf %0 : vector<8x32xf32> to vector<8x32xbf16>
    %c0_1 = arith.constant 0 : index
    %c0_2 = arith.constant 0 : index
    %2 = vector.load %arg2[%c0_1, %c0_2] : memref<32x128xbf16, #tpu.memory_space<vmem>>, vector<32x128xbf16>
    %cst = arith.constant dense<0.000000e+00> : vector<8x128xf32>
    %3 = tpu.matmul %1, %2, %cst {dimension_numbers = #tpu.dot_dimension_numbers<[1], [0], [0], [1], [0, 0, 1, 1], [], []>} : vector<8x32xbf16>, vector<32x128xbf16>, vector<8x128xf32> -> vector<8x128xf32>
    %c0_3 = arith.constant 0 : index
    %c0_4 = arith.constant 0 : index
    %4 = vector.load %arg3[%c0_3, %c0_4] : memref<1x128xf32, #tpu.memory_space<vmem>>, vector<1x128xf32>
    %5 = vector.broadcast %4 : vector<1x128xf32> to vector<8x128xf32>
    %6 = arith.addf %3, %5 : vector<8x128xf32>
    %cst_5 = arith.constant 0.000000e+00 : f32
    %7 = vector.broadcast %cst_5 : f32 to vector<8x128xf32>
    %8 = arith.maximumf %6, %7 : vector<8x128xf32>
    %9 = arith.truncf %8 : vector<8x128xf32> to vector<8x128xbf16>
    %c0_6 = arith.constant 0 : index
    %c0_7 = arith.constant 0 : index
    %10 = vector.load %arg4[%c0_6, %c0_7] : memref<128x128xbf16, #tpu.memory_space<vmem>>, vector<128x128xbf16>
    %cst_8 = arith.constant dense<0.000000e+00> : vector<8x128xf32>
    %11 = tpu.matmul %9, %10, %cst_8 {dimension_numbers = #tpu.dot_dimension_numbers<[1], [0], [0], [1], [0, 0, 1, 1], [], []>} : vector<8x128xbf16>, vector<128x128xbf16>, vector<8x128xf32> -> vector<8x128xf32>
    %c0_9 = arith.constant 0 : index
    %c0_10 = arith.constant 0 : index
    %12 = vector.load %arg5[%c0_9, %c0_10] : memref<1x128xf32, #tpu.memory_space<vmem>>, vector<1x128xf32>
    %13 = vector.broadcast %12 : vector<1x128xf32> to vector<8x128xf32>
    %14 = arith.addf %11, %13 : vector<8x128xf32>
    %cst_11 = arith.constant dense<0xFF800000> : vector<8xf32>
    %15 = vector.multi_reduction <maximumf>, %14, %cst_11 [1] : vector<8x128xf32> to vector<8xf32>
    %16 = vector.shape_cast %15 : vector<8xf32> to vector<8x1xf32>
    %17 = vector.broadcast %16 : vector<8x1xf32> to vector<8x128xf32>
    %18 = arith.subf %14, %17 : vector<8x128xf32>
    %19 = math.exp %18 : vector<8x128xf32>
    %cst_12 = arith.constant dense<0.000000e+00> : vector<8xf32>
    %20 = vector.multi_reduction <add>, %19, %cst_12 [1] : vector<8x128xf32> to vector<8xf32>
    %21 = vector.shape_cast %20 : vector<8xf32> to vector<8x1xf32>
    %22 = vector.broadcast %21 : vector<8x1xf32> to vector<8x128xf32>
    %23 = arith.divf %19, %22 : vector<8x128xf32>
    %c0_13 = arith.constant 0 : index
    %c0_14 = arith.constant 0 : index
    %24 = vector.load %arg6[%c0_13, %c0_14] : memref<8x128xf32, #tpu.memory_space<vmem>>, vector<8x128xf32>
    tpu.vector_store %arg6[%c0_13, %c0_14], %23 {strides = array<i32>} : memref<8x128xf32, #tpu.memory_space<vmem>>, vector<8x128xf32>,
    return
  }
  func.func @transform_0(%arg0: i32) -> (i32, i32) {
    %c0_i32 = arith.constant 0 : i32
    %c0_i32_0 = arith.constant 0 : i32
    return %arg0, %c0_i32 : i32, i32
  }
  func.func @transform_1(%arg0: i32) -> (i32, i32) {
    %c0_i32 = arith.constant 0 : i32
    %c0_i32_0 = arith.constant 0 : i32
    %c0_i32_1 = arith.constant 0 : i32
    return %c0_i32, %c0_i32_0 : i32, i32
  }
  func.func @transform_2(%arg0: i32) -> (i32, i32) {
    %c0_i32 = arith.constant 0 : i32
    %c0_i32_0 = arith.constant 0 : i32
    %c0_i32_1 = arith.constant 0 : i32
    return %c0_i32, %c0_i32_0 : i32, i32
  }
  func.func @transform_3(%arg0: i32) -> (i32, i32) {
    %c0_i32 = arith.constant 0 : i32
    %c0_i32_0 = arith.constant 0 : i32
    %c0_i32_1 = arith.constant 0 : i32
    return %c0_i32, %c0_i32_0 : i32, i32
  }
  func.func @transform_4(%arg0: i32) -> (i32, i32) {
    %c0_i32 = arith.constant 0 : i32
    %c0_i32_0 = arith.constant 0 : i32
    %c0_i32_1 = arith.constant 0 : i32
    return %c0_i32, %c0_i32_0 : i32, i32
  }
  func.func @transform_5(%arg0: i32) -> (i32, i32) {
    %c0_i32 = arith.constant 0 : i32
    %c0_i32_0 = arith.constant 0 : i32
    return %arg0, %c0_i32 : i32, i32
  }
}

</mosaic_0001>

<llo_original>
// kernel: tpu_custom_call.1
$region0: #{tpu_custom_call.1}
  #allocation0 [shape = 'u32[]', space=smem, size = 0x4, offset = 0x4, fixed_abs, tag = 'smem constant byte address 0x4 - core index']
  #allocation1 [shape = 'u32[144,128]{1,0:T(1,128)}', space=vmem, size = 0x12000, scoped, tag = 'internal scratch']
  %s0 = inlined_call_operand.hbm [shape: f32[8,32], index: 0, kind: input, shape index: {}]
  %s1 = inlined_call_operand.hbm [shape: bf16[32,128], index: 1, kind: input, shape index: {}]
  %s2 = inlined_call_operand.vmem [shape: f32[1,128], index: 2, kind: input, shape index: {}]
  %s3 = inlined_call_operand.hbm [shape: bf16[128,128], index: 3, kind: input, shape index: {}]
  %s4 = inlined_call_operand.vmem [shape: f32[1,128], index: 4, kind: input, shape index: {}]
  %s5 = inlined_call_operand.hbm [shape: f32[8,128], index: 5, kind: output, shape index: {}]
  %s6 = sld [smem:[#allocation0]]
  $region42: #{tpu_custom_call.1} parent=0
    _
  %s8 = ssub.s32 1, %s6
  %s9 = scalar_select 0, %s8, %s6
  $region1: #{tpu_custom_call.1} parent=0
    #allocation2 [shape = 'u8[4096]{0}', space=vmem, size = 0x1000, scoped, tag = 'input window, operand 0, single buffered']
    #allocation3 [shape = 's32[1]{0}', space=sflag, size = 0x4, scoped, tag = 'scoped memory for tpu_custom_call.1']
    #allocation4 [shape = 's32[1]{0}', space=sflag, size = 0x4, scoped, tag = 'scoped memory for tpu_custom_call.1']
    #allocation5 [shape = 'u8[8192]{0}', space=vmem, size = 0x2000, scoped, tag = 'input window, operand 1, single buffered']
    #allocation6 [shape = 's32[1]{0}', space=sflag, size = 0x4, scoped, tag = 'scoped memory for tpu_custom_call.1']
    #allocation7 [shape = 'u8[32768]{0}', space=vmem, size = 0x8000, scoped, tag = 'input window, operand 3, single buffered']
    #allocation8 [shape = 'u8[4096]{0}', space=vmem, size = 0x1000, scoped, tag = 'output window, operand 0, single buffered']
    %10 = vsyncpa [#allocation3], 0
    %11 = vsyncpa [#allocation6], 0
    %12 = vsyncpa [#allocation4], 0
    // Predicated region
    $region2: #{tpu_custom_call.1} parent=1 // pred_check
      _
    $region3: #{tpu_custom_call.1} parent=1 // pred_check_branch
      %14 = sbr.rel (0) target = $region5
    $region4: #{tpu_custom_call.1} parent=1 // pred_region
      %s16 = ssub.s32 128, 128
      %17 = vsyncadd [#allocation3], %s16
      %s19 = sshll.u32 [#allocation2], 4
      %s20 = int_to_ptr.vmem [resolvable:$true] %s19
      %22 = dma.hbm_to_vmem [thread:$0]  %s0, 128, %s20, [#allocation3]
    $region5: #{tpu_custom_call.1} parent=1 // pred_fallthru
      _
    // Predicated region
    $region6: #{tpu_custom_call.1} parent=1 // pred_check
      _
    $region7: #{tpu_custom_call.1} parent=1 // pred_check_branch
      %24 = sbr.rel (0) target = $region9
    $region8: #{tpu_custom_call.1} parent=1 // pred_region
      %s26 = ssub.s32 256, 256
      %27 = vsyncadd [#allocation6], %s26
      %s28 = sshll.u32 [#allocation5], 4
      %s29 = int_to_ptr.vmem [resolvable:$true] %s28
      %34 = dma.hbm_to_vmem [thread:$0]  %s1, 256, %s29, [#allocation6], 64, 64, 4
    $region9: #{tpu_custom_call.1} parent=1 // pred_fallthru
      _
    // Predicated region
    $region10: #{tpu_custom_call.1} parent=1 // pred_check
      _
    $region11: #{tpu_custom_call.1} parent=1 // pred_check_branch
      %36 = sbr.rel (0) target = $region13
    $region12: #{tpu_custom_call.1} parent=1 // pred_region
      _
    $region13: #{tpu_custom_call.1} parent=1 // pred_fallthru
      _
    // Predicated region
    $region14: #{tpu_custom_call.1} parent=1 // pred_check
      _
    $region15: #{tpu_custom_call.1} parent=1 // pred_check_branch
      %38 = sbr.rel (0) target = $region17
    $region16: #{tpu_custom_call.1} parent=1 // pred_region
      %s40 = ssub.s32 1024, 1024
      %41 = vsyncadd [#allocation6], %s40
      %s42 = sshll.u32 [#allocation7], 4
      %s43 = int_to_ptr.vmem [resolvable:$true] %s42
      %48 = dma.hbm_to_vmem [thread:$0]  %s3, 1024, %s43, [#allocation6], 64, 64, 4
    $region17: #{tpu_custom_call.1} parent=1 // pred_fallthru
      _
    // Predicated region
    $region18: #{tpu_custom_call.1} parent=1 // pred_check
      _
    $region19: #{tpu_custom_call.1} parent=1 // pred_check_branch
      %50 = sbr.rel (0) target = $region21
    $region20: #{tpu_custom_call.1} parent=1 // pred_region
      _
    $region21: #{tpu_custom_call.1} parent=1 // pred_fallthru
      _
    // Predicated region
    $region22: #{tpu_custom_call.1} parent=1 // pred_check
      _
    $region23: #{tpu_custom_call.1} parent=1 // pred_check_branch
      %52 = sbr.rel (0) target = $region25
    $region24: #{tpu_custom_call.1} parent=1 // pred_region
      %53 = dma.done [#allocation3], 128
    $region25: #{tpu_custom_call.1} parent=1 // pred_fallthru
      _
    // Predicated region
    $region26: #{tpu_custom_call.1} parent=1 // pred_check
      _
    $region27: #{tpu_custom_call.1} parent=1 // pred_check_branch
      %55 = sbr.rel (0) target = $region29
    $region28: #{tpu_custom_call.1} parent=1 // pred_region
      %56 = dma.done [#allocation6], 256
    $region29: #{tpu_custom_call.1} parent=1 // pred_fallthru
      _
    // Predicated region
    $region30: #{tpu_custom_call.1} parent=1 // pred_check
      _
    $region31: #{tpu_custom_call.1} parent=1 // pred_check_branch
      %58 = sbr.rel (0) target = $region33
    $region32: #{tpu_custom_call.1} parent=1 // pred_region
      %59 = dma.done [#allocation6], 1024
    $region33: #{tpu_custom_call.1} parent=1 // pred_fallthru
      _
    %v61 = vld [vmem:[#allocation2] sm:$0xff]
    %v62 = vpack.c.bf16 %v61, %v61
    %v63 = vld [vmem:[#allocation5] sm:$0xf]
    %v64 = vld [vmem:[#allocation5 + $0x4] sm:$0xf]
    %v65 = vld [vmem:[#allocation5 + $0x8] sm:$0xf]
    %v66 = vld [vmem:[#allocation5 + $0xc] sm:$0xf]
    %v67 = vld [vmem:[%s2] sm:$0x1]
    %v69 = vlaneseq
    %v70 = vshrl.u32 %v69, 7
    %v71 = vsub.s32 0, %v70
    %v72 = vrot.slane %v67, %v71
    %v78 = vunpack.c.l.b16 %v63
    %v79 = vunpack.c.l.b16 %v64
    %v80 = vunpack.c.l.b16 %v65
    %v81 = vunpack.c.l.b16 %v66
    %v82 = vpack.c.b16 %v79, %v78
    %v83 = vpack.c.b16 %v81, %v80
    %vm86 = vcmask 261120
    %v88 = vsel %vm86, %v62, 0
    %90 = vmatprep.subr.bf16.mxu0 0
    %91 = vmatpush1.bf16.msra.mxu0 %v82
    %92 = vmatprep.subr.bf16.mxu0 0
    %93 = vmatpush1.bf16.msra.mxu0 %v83
    %94 = vmatprep.subr.bf16.mxu0 0
    %95 = vmatpush1.bf16.msra.mxu0 0
    %96 = vmatprep.subr.bf16.mxu0 0
    %97 = vmatpush1.bf16.msra.mxu0 0
    %98 = vmatprep.subr.bf16.mxu0 0
    %99 = vmatpush1.bf16.msra.mxu0 0
    %100 = vmatprep.subr.bf16.mxu0 0
    %101 = vmatpush1.bf16.msra.mxu0 0
    %102 = vmatprep.subr.bf16.mxu0 0
    %103 = vmatpush1.bf16.msra.mxu0 0
    %104 = vmatprep.subr.bf16.mxu0 0
    %105 = vmatpush1.bf16.msra.mxu0 0
    %106 = vmatprep.subr.bf16.mxu0 0
    %107 = vmatpush1.bf16.msra.mxu0 0
    %108 = vmatprep.subr.bf16.mxu0 0
    %109 = vmatpush1.bf16.msra.mxu0 0
    %110 = vmatprep.subr.bf16.mxu0 0
    %111 = vmatpush1.bf16.msra.mxu0 0
    %112 = vmatprep.subr.bf16.mxu0 0
    %113 = vmatpush1.bf16.msra.mxu0 0
    %114 = vmatprep.subr.bf16.mxu0 0
    %115 = vmatpush1.bf16.msra.mxu0 0
    %116 = vmatprep.subr.bf16.mxu0 0
    %117 = vmatpush1.bf16.msra.mxu0 0
    %118 = vmatprep.subr.bf16.mxu0 0
    %119 = vmatpush1.bf16.msra.mxu0 0
    %120 = vmatprep.subr.bf16.mxu0 0
    %121 = vmatpush1.bf16.msra.mxu0 0
    %122 = vmatprep.mubr.bf16.mxu0 0
    %123 = vmatmul.mubr.bf16.gmra.mrb[0].mxu0 %v88
    %v124 = vpop.f32.mrb[0].mxu0
    %v125 = vadd.f32 %v72, %v124
    %v126 = vpop.f32.mrb[0].mxu0
    %v127 = vpop.f32.mrb[0].mxu0
    %v128 = vpop.f32.mrb[0].mxu0
    %129 = vdwg.mxu0
    %v130 = vmax.f32 %v125, 0.0
    %v131 = vpack.c.bf16 %v130, %v130
    %v132 = vld [vmem:[#allocation7] sm:$0xf]
    %v133 = vld [vmem:[#allocation7 + $0x4] sm:$0xf]
    %v134 = vld [vmem:[#allocation7 + $0x8] sm:$0xf]
    %v135 = vld [vmem:[#allocation7 + $0xc] sm:$0xf]
    %v136 = vld [vmem:[#allocation7 + $0x10] sm:$0xf]
    %v137 = vld [vmem:[#allocation7 + $0x14] sm:$0xf]
    %v138 = vld [vmem:[#allocation7 + $0x18] sm:$0xf]
    %v139 = vld [vmem:[#allocation7 + $0x1c] sm:$0xf]
    %v140 = vld [vmem:[#allocation7 + $0x20] sm:$0xf]
    %v141 = vld [vmem:[#allocation7 + $0x24] sm:$0xf]
    %v142 = vld [vmem:[#allocation7 + $0x28] sm:$0xf]
    %v143 = vld [vmem:[#allocation7 + $0x2c] sm:$0xf]
    %v144 = vld [vmem:[#allocation7 + $0x30] sm:$0xf]
    %v145 = vld [vmem:[#allocation7 + $0x34] sm:$0xf]
    %v146 = vld [vmem:[#allocation7 + $0x38] sm:$0xf]
    %v147 = vld [vmem:[#allocation7 + $0x3c] sm:$0xf]
    %v148 = vld [vmem:[%s4] sm:$0x1]
    %v150 = vlaneseq
    %v151 = vshrl.u32 %v150, 7
    %v152 = vsub.s32 0, %v151
    %v153 = vrot.slane %v148, %v152
    %v171 = vunpack.c.l.b16 %v132
    %v172 = vunpack.c.l.b16 %v133
    %v173 = vunpack.c.l.b16 %v134
    %v174 = vunpack.c.l.b16 %v135
    %v175 = vunpack.c.l.b16 %v136
    %v176 = vunpack.c.l.b16 %v137
    %v177 = vunpack.c.l.b16 %v138
    %v178 = vunpack.c.l.b16 %v139
    %v179 = vunpack.c.l.b16 %v140
    %v180 = vunpack.c.l.b16 %v141
    %v181 = vunpack.c.l.b16 %v142
    %v182 = vunpack.c.l.b16 %v143
    %v183 = vunpack.c.l.b16 %v144
    %v184 = vunpack.c.l.b16 %v145
    %v185 = vunpack.c.l.b16 %v146
    %v186 = vunpack.c.l.b16 %v147
    %v187 = vpack.c.b16 %v172, %v171
    %v188 = vpack.c.b16 %v174, %v173
    %v189 = vpack.c.b16 %v176, %v175
    %v190 = vpack.c.b16 %v178, %v177
    %v191 = vpack.c.b16 %v180, %v179
    %v192 = vpack.c.b16 %v182, %v181
    %v193 = vpack.c.b16 %v184, %v183
    %v194 = vpack.c.b16 %v186, %v185
    %203 = vmatprep.subr.bf16.mxu0 0
    %204 = vmatpush1.bf16.msra.mxu0 %v187
    %205 = vmatprep.subr.bf16.mxu0 0
    %206 = vmatpush1.bf16.msra.mxu0 %v188
    %207 = vmatprep.subr.bf16.mxu0 0
    %208 = vmatpush1.bf16.msra.mxu0 %v189
    %209 = vmatprep.subr.bf16.mxu0 0
    %210 = vmatpush1.bf16.msra.mxu0 %v190
    %211 = vmatprep.subr.bf16.mxu0 0
    %212 = vmatpush1.bf16.msra.mxu0 %v191
    %213 = vmatprep.subr.bf16.mxu0 0
    %214 = vmatpush1.bf16.msra.mxu0 %v192
    %215 = vmatprep.subr.bf16.mxu0 0
    %216 = vmatpush1.bf16.msra.mxu0 %v193
    %217 = vmatprep.subr.bf16.mxu0 0
    %218 = vmatpush1.bf16.msra.mxu0 %v194
    %219 = vmatprep.subr.bf16.mxu0 0
    %220 = vmatpush1.bf16.msra.mxu0 0
    %221 = vmatprep.subr.bf16.mxu0 0
    %222 = vmatpush1.bf16.msra.mxu0 0
    %223 = vmatprep.subr.bf16.mxu0 0
    %224 = vmatpush1.bf16.msra.mxu0 0
    %225 = vmatprep.subr.bf16.mxu0 0
    %226 = vmatpush1.bf16.msra.mxu0 0
    %227 = vmatprep.subr.bf16.mxu0 0
    %228 = vmatpush1.bf16.msra.mxu0 0
    %229 = vmatprep.subr.bf16.mxu0 0
    %230 = vmatpush1.bf16.msra.mxu0 0
    %231 = vmatprep.subr.bf16.mxu0 0
    %232 = vmatpush1.bf16.msra.mxu0 0
    %233 = vmatprep.subr.bf16.mxu0 0
    %234 = vmatpush1.bf16.msra.mxu0 0
    %235 = vmatprep.mubr.bf16.mxu0 0
    %236 = vmatmul.mubr.bf16.gmra.mrb[0].mxu0 %v131
    %v237 = vpop.f32.mrb[0].mxu0
    %v238 = vadd.f32 %v153, %v237
    %v239 = vpop.f32.mrb[0].mxu0
    %v240 = vpop.f32.mrb[0].mxu0
    %v241 = vpop.f32.mrb[0].mxu0
    %242 = vdwg.mxu0
    %243 = vmax.xlane.f32.xlu0 %v238
    %v244 = vpop.xlane.xlu0 %243
    %v245 = vsub.f32 %v238, %v244
    %v246 = vmul.f32 %v245, 1.442695
    %v247 = vpow.pop %v246
    %248 = vadd.xlane.f32.xlu0 %v247
    %v249 = vpop.xlane.xlu0 %248
    %v250 = vrcp.pop %v249
    %v251 = vmul.f32 %v247, %v250
    %252 = vst [vmem:[#allocation8] sm:$0xff] %v251
    // Predicated region
    $region34: #{tpu_custom_call.1} parent=1 // pred_check
      _
    $region35: #{tpu_custom_call.1} parent=1 // pred_check_branch
      %254 = sbr.rel (0) target = $region37
    $region36: #{tpu_custom_call.1} parent=1 // pred_region
      %s256 = ssub.s32 128, 128
      %257 = vsyncadd [#allocation4], %s256
      %s259 = sshll.u32 [#allocation8], 4
      %s260 = int_to_ptr.vmem [resolvable:$true] %s259
      %262 = dma.vmem_to_hbm [thread:$0]  %s260, 128, %s5, [#allocation4]
    $region37: #{tpu_custom_call.1} parent=1 // pred_fallthru
      _
    // Predicated region
    $region38: #{tpu_custom_call.1} parent=1 // pred_check
      _
    $region39: #{tpu_custom_call.1} parent=1 // pred_check_branch
      %264 = sbr.rel (0) target = $region41
    $region40: #{tpu_custom_call.1} parent=1 // pred_region
      %265 = dma.done [#allocation4], 128
    $region41: #{tpu_custom_call.1} parent=1 // pred_fallthru
      _
    %266 = vsyncpa [#allocation3], 1
    %267 = vsyncpa [#allocation6], 1
    %268 = vsyncpa [#allocation4], 1

</llo_original>
